<compile_context>
chip_gen: v6e
topology: v6e:2x2x1
jax: 0.10.0
libtpu: 0.0.40
codegen_flags: <defaults>
</compile_context>

<pallas_src>
import functools
import math

import jax
import jax.numpy as jnp
from jax.experimental import pallas as pl
from jax.experimental.pallas import tpu as pltpu

# ---------------------------------------------------------------------------
# Model constants (size_dict_WSI["small"], 6 genomic groups, batch == 1)
# ---------------------------------------------------------------------------
D_MODEL = 256
NHEAD = 8
HEAD_DIM = D_MODEL // NHEAD            # 32
H3 = 3 * NHEAD                         # 24 packed q|k|v head rows per MHA
FFN_DIM = 512
N_CLASSES = 4
NUM_EXPERTS = 3
SIZE = (768, 256, 256)
OMIC_SIZES = (8, 10, 12, 14, 16, 18)   # 6 genomic groups
S_PAD = 24                             # max omic length (18) rounded to 8 sublanes
N_PATH = 8
UOT_REG = 0.1
UOT_TAU = 0.5
UOT_ITERS = 100
LN_EPS = 1e-5
NEG_INF = -1e30
SCALE = 1.0 / math.sqrt(HEAD_DIM)
WDT = jnp.bfloat16                     # storage dtype for large weight matrices
VMEM_LIMIT = 32 * 1024 * 1024


# ---------------------------------------------------------------------------
# In-kernel math helpers (operate on loaded jnp arrays / sliced Refs)
# ---------------------------------------------------------------------------
def _ln(x, g, b):
    mu = jnp.mean(x, axis=-1, keepdims=True)
    xc = x - mu
    var = jnp.mean(xc * xc, axis=-1, keepdims=True)
    return xc * jax.lax.rsqrt(var + LN_EPS) * g + b


def _softmax_last(s):
    m = jnp.max(s, axis=-1, keepdims=True)
    p = jnp.exp(s - m)
    return p * pl.reciprocal(jnp.sum(p, axis=-1, keepdims=True), approx=True)


def _mha(q_in, kv_in, w_in, b_in, w_out, b_out, bias=None):
    """Multi-head attention with head-split packed weights (no reshapes).

    w_in : (3H, D, HD) bf16, rows [q heads | k heads | v heads]; the q part is
           already scaled by 1/sqrt(HD) at init.   b_in: (3H, 1, HD) f32.
    w_out: (H, HD, D) bf16.                        b_out: (1, D) f32.
    """
    lq, lk = q_in.shape[0], kv_in.shape[0]
    w_in = w_in.astype(jnp.float32)
    q_h = jnp.einsum(
        "hld,hdk->hlk",
        jnp.broadcast_to(q_in[None], (NHEAD, lq, D_MODEL)),
        w_in[:NHEAD], preferred_element_type=jnp.float32) + b_in[:NHEAD]
    kv_h = jnp.einsum(
        "hld,hdk->hlk",
        jnp.broadcast_to(kv_in[None], (2 * NHEAD, lk, D_MODEL)),
        w_in[NHEAD:], preferred_element_type=jnp.float32) + b_in[NHEAD:]
    k_h, v_h = kv_h[:NHEAD], kv_h[NHEAD:]
    s = jnp.einsum("hqd,hkd->hqk", q_h, k_h, preferred_element_type=jnp.float32)
    if bias is not None:
        s = s + bias                                   # key-padding additive mask
    p = _softmax_last(s)
    o_h = jnp.einsum("hqk,hkd->hqd", p, v_h, preferred_element_type=jnp.float32)
    out = jnp.einsum("hqd,hdo->hqo", o_h, w_out.astype(jnp.float32),
                     preferred_element_type=jnp.float32)
    return jnp.sum(out, axis=0) + b_out


def _ffn(x, w1, b1, w2, b2):
    h = jnp.maximum(
        jnp.dot(x, w1.astype(jnp.float32), preferred_element_type=jnp.float32) + b1,
        0.0)
    return jnp.dot(h, w2.astype(jnp.float32), preferred_element_type=jnp.float32) + b2


def _encoder_stack(x, bias, wi, bi, wo, bo, f1, g1, f2, g2, ln):
    """2 fused nn.TransformerEncoderLayer (post-norm, relu, dropout=identity).
    All weight Refs carry a leading block dim of 1 (the grid axis)."""
    for l in range(2):
        lnl = ln[0, l * 4:(l + 1) * 4]
        sa = _mha(x, x,
                  wi[0, l * H3:(l + 1) * H3], bi[0, l * H3:(l + 1) * H3],
                  wo[0, l * NHEAD:(l + 1) * NHEAD], bo[0, l:l + 1], bias=bias)
        x = _ln(x + sa, lnl[0:1], lnl[1:2])
        x = _ln(x + _ffn(x, f1[0, l], g1[0, l], f2[0, l], g2[0, l]),
                lnl[2:3], lnl[3:4])
    return x


def _decoder_stack(x, mem, wi, bi, wo, bo, f1, g1, f2, g2, ln):
    """2 fused nn.TransformerDecoderLayer (post-norm, relu, no masks)."""
    for l in range(2):
        s, c = 2 * l, 2 * l + 1
        lnl = ln[0, l * 6:(l + 1) * 6]
        sa = _mha(x, x,
                  wi[0, s * H3:(s + 1) * H3], bi[0, s * H3:(s + 1) * H3],
                  wo[0, s * NHEAD:(s + 1) * NHEAD], bo[0, s:s + 1])
        x = _ln(x + sa, lnl[0:1], lnl[1:2])
        ca = _mha(x, mem,
                  wi[0, c * H3:(c + 1) * H3], bi[0, c * H3:(c + 1) * H3],
                  wo[0, c * NHEAD:(c + 1) * NHEAD], bo[0, c:c + 1])
        x = _ln(x + ca, lnl[2:3], lnl[3:4])
        x = _ln(x + _ffn(x, f1[0, l], g1[0, l], f2[0, l], g2[0, l]),
                lnl[4:5], lnl[5:6])
    return x


# ---------------------------------------------------------------------------
# Pallas kernels
# ---------------------------------------------------------------------------
def _wsi_kernel(x_ref, w_ref, b_ref, o_ref):
    o_ref[...] = jnp.maximum(
        jnp.dot(x_ref[...], w_ref[...].astype(jnp.float32),
                preferred_element_type=jnp.float32) + b_ref[...], 0.0)


def _text_kernel(x_ref, a1_ref, a2_ref, pw_ref, pb_ref, alpha_ref, o_ref):
    # TODO(synk): clip.tokenize + CLIP ViT-L/14 encode_text has no Pallas
    # equivalent; the kernel starts from a 768-d text feature and runs only the
    # trainable Adapter + projection path (all 5 text rows in one call).
    x = x_ref[...]
    a = jnp.maximum(jnp.dot(x, a1_ref[...].astype(jnp.float32),
                            preferred_element_type=jnp.float32), 0.0)
    a = jnp.maximum(jnp.dot(a, a2_ref[...].astype(jnp.float32),
                            preferred_element_type=jnp.float32), 0.0)
    al = alpha_ref[...]
    f = al * a + (1.0 - al) * x
    o_ref[...] = jnp.maximum(
        jnp.dot(f, pw_ref[...].astype(jnp.float32),
                preferred_element_type=jnp.float32) + pb_ref[...], 0.0)


def _gene_branch_kernel(x_ref, bias_ref, pool_ref,
                        wi, bi, wo, bo, f1, g1, f2, g2, ln, o_ref):
    """One gene group per grid step: 2 fused encoder layers + masked mean pool.
    The Linear(1,256) projection + positional encoding are applied in glue."""
    x = _encoder_stack(x_ref[0], bias_ref[...],
                       wi, bi, wo, bo, f1, g1, f2, g2, ln)          # (S_PAD, D)
    o_ref[0] = jnp.dot(pool_ref[0], x, preferred_element_type=jnp.float32)


def _uot_coattn_kernel(xp_ref, xo_ref, y_ref, o_ref, *, reg, reg_m, n_iters):
    """Both unbalanced-OT Sinkhorn chains (path & omic vs. text), interleaved
    in a single fori_loop, plus the co-attention matmuls pi.T @ h_bag.
    TODO(synk): POT runs float64 until convergence; here f32 + fixed iterations.
    """
    xp = xp_ref[...]                       # (N_path, D)
    xo = xo_ref[...]                       # (6, D)
    y = y_ref[...]                         # (4, D)
    yn = y - jnp.min(y, axis=-1, keepdims=True)
    y2 = jnp.sum(yn * yn, axis=-1, keepdims=True)                  # (4, 1)
    ones_row = jnp.ones((1, D_MODEL), jnp.float32)

    def make_kt(x):
        # squared cdist built directly in transposed (4, N) orientation so the
        # transport plan comes out already transposed (no in-kernel transpose).
        xn = x - jnp.min(x, axis=-1, keepdims=True)
        x2 = jnp.einsum("kd,nd->kn", ones_row, xn * xn,
                        preferred_element_type=jnp.float32)        # (1, N)
        cross = jnp.einsum("md,nd->mn", yn, xn,
                           preferred_element_type=jnp.float32)     # (4, N)
        cost = jnp.clip(y2 + x2 - 2.0 * cross, 0.0, 1e10)
        cost = cost / (jnp.max(cost) + 1e-8)
        return jnp.exp(-cost / reg)

    ktp = make_kt(xp)                      # (4, N_path)   == K_path.T
    kto = make_kt(xo)                      # (4, 6)        == K_omic.T
    n_p, n_o, m = xp.shape[0], xo.shape[0], y.shape[0]
    fi = reg_m / (reg_m + reg)
    log_ap, log_ao, log_b = math.log(1.0 / n_p), math.log(1.0 / n_o), math.log(1.0 / m)

    up0 = jnp.full((1, n_p), 1.0 / n_p, jnp.float32)
    uo0 = jnp.full((1, n_o), 1.0 / n_o, jnp.float32)
    vp0 = jnp.full((m, 1), 1.0 / m, jnp.float32)
    vo0 = jnp.full((m, 1), 1.0 / m, jnp.float32)

    def body(_, carry):
        up, vp, uo, vo = carry
        kvp = jnp.sum(ktp * vp, axis=0, keepdims=True)             # (1, Np)
        up = jnp.exp(fi * (log_ap - jnp.log(kvp)))
        kvo = jnp.sum(kto * vo, axis=0, keepdims=True)
        uo = jnp.exp(fi * (log_ao - jnp.log(kvo)))
        ktup = jnp.sum(ktp * up, axis=1, keepdims=True)            # (4, 1)
        vp = jnp.exp(fi * (log_b - jnp.log(ktup)))
        ktuo = jnp.sum(kto * uo, axis=1, keepdims=True)
        vo = jnp.exp(fi * (log_b - jnp.log(ktuo)))
        return up, vp, uo, vo

    up, vp, uo, vo = jax.lax.fori_loop(0, n_iters, body, (up0, vp0, uo0, vo0))
    # pi.T = v * K.T * u  (shape (4, N));  co-attention = pi.T @ h_bag
    o_ref[0] = jnp.dot(vo * kto * uo, xo, preferred_element_type=jnp.float32)
    o_ref[1] = jnp.dot(vp * ktp * up, xp, preferred_element_type=jnp.float32)


def _branch_kernel(x_ref, mem_ref, wi, bi, wo, bo, f1, g1, f2, g2, ln,
                   aw, ab, bw, bb, cw, cb, rw, rb, o_ref):
    """Per grid step (0=omic, 1=path): 2 decoder layers + Attn_Net_Gated
    softmax pooling + rho (Linear + ReLU; dropout = identity in eval)."""
    x = _decoder_stack(x_ref[...], mem_ref[0],
                       wi, bi, wo, bo, f1, g1, f2, g2, ln)          # (4, D)
    a = jnp.tanh(jnp.dot(x, aw[0].astype(jnp.float32),
                         preferred_element_type=jnp.float32) + ab[0])
    b = jax.nn.sigmoid(jnp.dot(x, bw[0].astype(jnp.float32),
                               preferred_element_type=jnp.float32) + bb[0])
    logit = jnp.sum(a * b * cw[0], axis=-1, keepdims=True) + cb[0]  # (4, 1)
    w = jnp.exp(logit - jnp.max(logit, axis=0, keepdims=True))
    w = w * pl.reciprocal(jnp.sum(w, axis=0, keepdims=True), approx=True)
    pooled = jnp.sum(w * x, axis=0, keepdims=True)                  # (1, D)
    o_ref[0] = jnp.maximum(
        jnp.dot(pooled, rw[0].astype(jnp.float32),
                preferred_element_type=jnp.float32) + rb[0], 0.0)


def _uni_kernel(x_ref, mem_ref, wi, bi, wo, bo, f1, g1, f2, g2, ln,
                m1w, m1b, m2w, m2b, c1w, c1b, c2w, c2b, h_ref, lg_ref):
    """Per grid step (0=shared mm, 1..3=experts): UniModule_Guided (2 decoder
    layers + flatten + mm MLP) and the expert classifier (zero weights for the
    shared unit; its logits row is ignored by the caller)."""
    x = _decoder_stack(x_ref[...], mem_ref[...],
                       wi, bi, wo, bo, f1, g1, f2, g2, ln)          # (4, D)
    # mm: Linear(4*D -> D) on the flattened rows, done as 4 row-block matmuls
    # (the (1024,256) weight is pre-reshaped to (4,256,256) at init).
    h = m1b[0]
    for t in range(4):
        h = h + jnp.dot(x[t:t + 1, :], m1w[0, t].astype(jnp.float32),
                        preferred_element_type=jnp.float32)
    h = jnp.maximum(h, 0.0)
    h = jnp.maximum(
        jnp.dot(h, m2w[0].astype(jnp.float32),
                preferred_element_type=jnp.float32) + m2b[0], 0.0)  # (1, D)
    h_ref[0] = h
    c = jnp.maximum(
        jnp.dot(h, c1w[0].astype(jnp.float32),
                preferred_element_type=jnp.float32) + c1b[0], 0.0)
    lg_ref[0] = jnp.dot(c, c2w[0].astype(jnp.float32),
                        preferred_element_type=jnp.float32) + c2b[0]


def _head_kernel(x_ref, w1_ref, b1_ref, w2_ref, b2_ref, o_ref):
    h = jnp.maximum(
        jnp.dot(x_ref[...], w1_ref[...].astype(jnp.float32),
                preferred_element_type=jnp.float32) + b1_ref[...], 0.0)
    o_ref[...] = jnp.dot(h, w2_ref[...].astype(jnp.float32),
                         preferred_element_type=jnp.float32) + b2_ref[...]


# ---------------------------------------------------------------------------
# pallas_call wrappers
# ---------------------------------------------------------------------------
def pallas_wsi(x, p):
    return pl.pallas_call(
        _wsi_kernel,
        out_shape=jax.ShapeDtypeStruct((x.shape[0], SIZE[1]), jnp.float32),
    )(x, p["w"], p["b"])


def pallas_text_encoder(x, p):
    return pl.pallas_call(
        _text_kernel,
        out_shape=jax.ShapeDtypeStruct((x.shape[0], SIZE[2]), jnp.float32),
    )(x, p["a1"], p["a2"], p["pw"], p["pb"], p["alpha"])


def pallas_gene_branch(x0, attn_bias, pool_w, s):
    n_g = x0.shape[0]
    g3 = lambda g: (g, 0, 0)
    g4 = lambda g: (g, 0, 0, 0)
    out = pl.pallas_call(
        _gene_branch_kernel,
        out_shape=jax.ShapeDtypeStruct((n_g, 1, D_MODEL), jnp.float32),
        grid=(n_g,),
        in_specs=[
            pl.BlockSpec((1, S_PAD, D_MODEL), g3),                  # x0
            pl.BlockSpec((1, 1, S_PAD), g3),                        # attn bias
            pl.BlockSpec((1, 1, S_PAD), g3),                        # pooling weights
            pl.BlockSpec((1, 2 * H3, D_MODEL, HEAD_DIM), g4),       # wi
            pl.BlockSpec((1, 2 * H3, 1, HEAD_DIM), g4),             # bi
            pl.BlockSpec((1, 2 * NHEAD, HEAD_DIM, D_MODEL), g4),    # wo
            pl.BlockSpec((1, 2, D_MODEL), g3),                      # bo
            pl.BlockSpec((1, 2, D_MODEL, FFN_DIM), g4),             # f1
            pl.BlockSpec((1, 2, 1, FFN_DIM), g4),                   # g1
            pl.BlockSpec((1, 2, FFN_DIM, D_MODEL), g4),             # f2
            pl.BlockSpec((1, 2, 1, D_MODEL), g4),                   # g2
            pl.BlockSpec((1, 8, D_MODEL), g3),                      # ln
        ],
        out_specs=pl.BlockSpec((1, 1, D_MODEL), g3),
        compiler_params=pltpu.CompilerParams(
            dimension_semantics=("parallel",), vmem_limit_bytes=VMEM_LIMIT),
    )(x0, attn_bias, pool_w, s["wi"], s["bi"], s["wo"], s["bo"],
      s["f1"], s["g1"], s["f2"], s["g2"], s["ln"])
    return out[:, 0, :]


def pallas_uot_coattn(h_path, h_omic, h_text):
    return pl.pallas_call(
        functools.partial(_uot_coattn_kernel, reg=UOT_REG, reg_m=UOT_TAU,
                          n_iters=UOT_ITERS),
        out_shape=jax.ShapeDtypeStruct((2, h_text.shape[0], D_MODEL), jnp.float32),
    )(h_path, h_omic, h_text)


def _dec_specs():
    g3 = lambda u: (u, 0, 0)
    g4 = lambda u: (u, 0, 0, 0)
    return [
        pl.BlockSpec((1, 4 * H3, D_MODEL, HEAD_DIM), g4),           # wi
        pl.BlockSpec((1, 4 * H3, 1, HEAD_DIM), g4),                 # bi
        pl.BlockSpec((1, 4 * NHEAD, HEAD_DIM, D_MODEL), g4),        # wo
        pl.BlockSpec((1, 4, D_MODEL), g3),                          # bo
        pl.BlockSpec((1, 2, D_MODEL, FFN_DIM), g4),                 # f1
        pl.BlockSpec((1, 2, 1, FFN_DIM), g4),                       # g1
        pl.BlockSpec((1, 2, FFN_DIM, D_MODEL), g4),                 # f2
        pl.BlockSpec((1, 2, 1, D_MODEL), g4),                       # g2
        pl.BlockSpec((1, 12, D_MODEL), g3),                         # ln
    ]


def pallas_branch_pair(h_text, coattn, p):
    d = p["dec"]
    g3 = lambda u: (u, 0, 0)
    cst = lambda u: (0, 0)
    return pl.pallas_call(
        _branch_kernel,
        out_shape=jax.ShapeDtypeStruct((2, 1, D_MODEL), jnp.float32),
        grid=(2,),
        in_specs=[pl.BlockSpec((4, D_MODEL), cst),
                  pl.BlockSpec((1, 4, D_MODEL), g3)] + _dec_specs() + [
            pl.BlockSpec((1, D_MODEL, D_MODEL), g3),                # aw
            pl.BlockSpec((1, 1, D_MODEL), g3),                      # ab
            pl.BlockSpec((1, D_MODEL, D_MODEL), g3),                # bw
            pl.BlockSpec((1, 1, D_MODEL), g3),                      # bb
            pl.BlockSpec((1, 1, D_MODEL), g3),                      # cw
            pl.BlockSpec((1, 1, 1), g3),                            # cb
            pl.BlockSpec((1, D_MODEL, D_MODEL), g3),                # rw
            pl.BlockSpec((1, 1, D_MODEL), g3),                      # rb
        ],
        out_specs=pl.BlockSpec((1, 1, D_MODEL), g3),
        compiler_params=pltpu.CompilerParams(
            dimension_semantics=("parallel",), vmem_limit_bytes=VMEM_LIMIT),
    )(h_text, coattn, d["wi"], d["bi"], d["wo"], d["bo"],
      d["f1"], d["g1"], d["f2"], d["g2"], d["ln"],
      p["aw"], p["ab"], p["bw"], p["bb"], p["cw"], p["cb"], p["rw"], p["rb"])


def pallas_uni_experts(h_text, mem, p):
    d = p["dec"]
    n_u = 1 + NUM_EXPERTS
    g3 = lambda u: (u, 0, 0)
    g4 = lambda u: (u, 0, 0, 0)
    cst = lambda u: (0, 0)
    return pl.pallas_call(
        _uni_kernel,
        out_shape=(jax.ShapeDtypeStruct((n_u, 1, D_MODEL), jnp.float32),
                   jax.ShapeDtypeStruct((n_u, 1, N_CLASSES), jnp.float32)),
        grid=(n_u,),
        in_specs=[pl.BlockSpec((4, D_MODEL), cst),
                  pl.BlockSpec((2, D_MODEL), cst)] + _dec_specs() + [
            pl.BlockSpec((1, 4, D_MODEL, D_MODEL), g4),             # m1w
            pl.BlockSpec((1, 1, D_MODEL), g3),                      # m1b
            pl.BlockSpec((1, D_MODEL, D_MODEL), g3),                # m2w
            pl.BlockSpec((1, 1, D_MODEL), g3),                      # m2b
            pl.BlockSpec((1, D_MODEL, D_MODEL), g3),                # c1w
            pl.BlockSpec((1, 1, D_MODEL), g3),                      # c1b
            pl.BlockSpec((1, D_MODEL, N_CLASSES), g3),              # c2w
            pl.BlockSpec((1, 1, N_CLASSES), g3),                    # c2b
        ],
        out_specs=(pl.BlockSpec((1, 1, D_MODEL), g3),
                   pl.BlockSpec((1, 1, N_CLASSES), g3)),
        compiler_params=pltpu.CompilerParams(
            dimension_semantics=("parallel",), vmem_limit_bytes=VMEM_LIMIT),
    )(h_text, mem, d["wi"], d["bi"], d["wo"], d["bo"],
      d["f1"], d["g1"], d["f2"], d["g2"], d["ln"],
      p["m1w"], p["m1b"], p["m2w"], p["m2b"],
      p["c1w"], p["c1b"], p["c2w"], p["c2b"])


def pallas_dataset_head(x, p):
    return pl.pallas_call(
        _head_kernel,
        out_shape=jax.ShapeDtypeStruct((x.shape[0], 5), jnp.float32),
    )(x, p["w1"], p["b1"], p["w2"], p["b2"])


# ---------------------------------------------------------------------------
# Forward pass (glue orchestrating the fused kernels)
# ---------------------------------------------------------------------------
def moe_forward(P, item):
    # ---- WSI branch --------------------------------------------------------
    h_path_bag = pallas_wsi(item["path_feats"], P["wsi"])               # (N_path, D)

    # ---- Genomics branch: all 6 gene groups in one gridded kernel ----------
    n_g = len(OMIC_SIZES)
    if item.get("omic_missing", False):
        h_omic_bag = jnp.full((n_g, D_MODEL), 1e-4, jnp.float32)
    else:
        gene_pad = jnp.zeros((n_g, S_PAD), jnp.float32)
        mask_pad = jnp.zeros((n_g, S_PAD), jnp.float32)
        for i, size in enumerate(OMIC_SIZES):
            gene_pad = gene_pad.at[i, :size].set(item["omics"][i])
            mask_pad = mask_pad.at[i, :size].set(item["masks"][i])
        valid = jnp.arange(S_PAD)[None, :] < jnp.array(OMIC_SIZES)[:, None]
        key_ok = valid & (mask_pad > 0.0)                # src_key_padding_mask + pad
        attn_bias = jnp.where(key_ok, 0.0, NEG_INF).astype(jnp.float32)[:, None, :]
        pool_w = (valid.astype(jnp.float32)
                  / jnp.array(OMIC_SIZES, jnp.float32)[:, None])[:, None, :]
        # Linear(1, 256) projection + PositionalEncoding (eval: no dropout)
        x0 = (gene_pad[:, :, None] * P["gene"]["proj_w"][:, None, :]
              + P["gene"]["proj_b"][:, None, :] + P["pe"][None, :, :])
        h_omic_bag = pallas_gene_branch(x0, attn_bias, pool_w, P["gene"]["stack"])

    # ---- Text branch: cancer/demographic/diagnosis/treatment + tumor row ---
    text_out = pallas_text_encoder(item["clip_feats"], P["text"])       # (5, D)
    h_text_bag = text_out[:4]
    tumor_emb = text_out[4:5]

    # ---- Unbalanced-OT co-attention (both modalities fused in one kernel) --
    coattn = pallas_uot_coattn(h_path_bag, h_omic_bag, h_text_bag)      # (2,4,D) [omic, path]

    # ---- path/omic decoder stacks + gated pooling + rho (grid of 2) --------
    res = pallas_branch_pair(h_text_bag, coattn, P["branch"])           # (2,1,D)
    h_omic_res, h_path_res = res[0], res[1]
    mem = res.reshape(2, D_MODEL)                                       # cat([h_omic, h_path])

    # ---- shared UniModule_Guided + 3 experts (grid of 4) -------------------
    h_all, logits_all = pallas_uni_experts(h_text_bag, mem, P["uni"])
    h_res = h_all[0]                                                    # (1, D)
    expert_logits = logits_all[1:, 0, :]                                # (E, C)

    # ---- routing / expert combination (matches the PyTorch einsum) ---------
    disease_emb = P["disease_emb"][item["disease_id"]][None, :]         # (1, D)
    routing = jnp.concatenate([disease_emb, tumor_emb], axis=-1)        # (1, 2D)
    scores_raw = P["combine_w"] @ routing.T                             # (E, 1)
    combine_scores = jax.nn.softmax(scores_raw, axis=1)  # softmax over size-1 dim -> ones
    # torch.einsum('ij,jik->ik', (E,1), (E,1,C)) with singleton broadcasting:
    combined_h = combine_scores * jnp.sum(expert_logits, axis=0, keepdims=True)
    h_out = jnp.mean(combined_h, axis=0)                                # (C,)
    return h_out, h_res[0], h_omic_res[0], h_path_res[0]


def umpsnet_forward(P, item):
    h, h_res, h_omic, h_path = moe_forward(P, item)
    logits = h[None, :]
    logits_dataset_h = pallas_dataset_head(h_res[None, :], P["cdh"])    # (1, 5)
    hazards = jax.nn.sigmoid(logits)
    S = jnp.cumprod(1.0 - hazards, axis=1)
    return {"logits_dataset_h": logits_dataset_h, "hazards": hazards, "S": S}


# ---------------------------------------------------------------------------
# Deterministic synthetic parameter init (pre-packed / pre-padded once)
# ---------------------------------------------------------------------------
def _rand_linear(key, din, dout, bias=True):
    kw, kb = jax.random.split(key)
    lim = 1.0 / math.sqrt(din)
    w = jax.random.uniform(kw, (din, dout), jnp.float32, -lim, lim)
    b = (jax.random.uniform(kb, (dout,), jnp.float32, -lim, lim)
         if bias else jnp.zeros((dout,), jnp.float32))
    return w, b


def _mha_pack(key):
    ks = jax.random.split(key, 4)
    wq, bq = _rand_linear(ks[0], D_MODEL, D_MODEL)
    wk, bk = _rand_linear(ks[1], D_MODEL, D_MODEL)
    wv, bv = _rand_linear(ks[2], D_MODEL, D_MODEL)
    wo, bo = _rand_linear(ks[3], D_MODEL, D_MODEL)
    wq, bq = wq * SCALE, bq * SCALE       # fold 1/sqrt(head_dim) into Q projection
    w_in = jnp.concatenate(
        [w.reshape(D_MODEL, NHEAD, HEAD_DIM).transpose(1, 0, 2)
         for w in (wq, wk, wv)], axis=0)                               # (3H, D, HD)
    b_in = jnp.concatenate(
        [b.reshape(NHEAD, 1, HEAD_DIM) for b in (bq, bk, bv)], axis=0)  # (3H, 1, HD)
    return w_in, b_in, wo.reshape(NHEAD, HEAD_DIM, D_MODEL), bo.reshape(1, D_MODEL)


def _ln_rows(n_ln):
    return jnp.concatenate(
        [jnp.ones((1, D_MODEL), jnp.float32),
         jnp.zeros((1, D_MODEL), jnp.float32)] * n_ln, axis=0)


def _finish_stack(wi, bi, wo, bo, f1, g1, f2, g2, ln):
    return {"wi": jnp.concatenate(wi, 0).astype(WDT),
            "bi": jnp.concatenate(bi, 0),
            "wo": jnp.concatenate(wo, 0).astype(WDT),
            "bo": jnp.concatenate(bo, 0),
            "f1": jnp.stack(f1).astype(WDT), "g1": jnp.stack(g1),
            "f2": jnp.stack(f2).astype(WDT), "g2": jnp.stack(g2),
            "ln": jnp.concatenate(ln, 0)}


def _enc_stack_init(key, n_layers=2):
    wi, bi, wo, bo, f1, g1, f2, g2, ln = ([] for _ in range(9))
    for k in jax.random.split(key, n_layers):
        k0, k1, k2 = jax.random.split(k, 3)
        a = _mha_pack(k0)
        wi.append(a[0]); bi.append(a[1]); wo.append(a[2]); bo.append(a[3])
        w1, b1 = _rand_linear(k1, D_MODEL, FFN_DIM)
        w2, b2 = _rand_linear(k2, FFN_DIM, D_MODEL)
        f1.append(w1); g1.append(b1.reshape(1, FFN_DIM))
        f2.append(w2); g2.append(b2.reshape(1, D_MODEL))
        ln.append(_ln_rows(2))
    return _finish_stack(wi, bi, wo, bo, f1, g1, f2, g2, ln)


def _dec_stack_init(key, n_layers=2):
    wi, bi, wo, bo, f1, g1, f2, g2, ln = ([] for _ in range(9))
    for k in jax.random.split(key, n_layers):
        k0, k1, k2, k3 = jax.random.split(k, 4)
        for ka in (k0, k1):                           # self-attn, cross-attn
            a = _mha_pack(ka)
            wi.append(a[0]); bi.append(a[1]); wo.append(a[2]); bo.append(a[3])
        w1, b1 = _rand_linear(k2, D_MODEL, FFN_DIM)
        w2, b2 = _rand_linear(k3, FFN_DIM, D_MODEL)
        f1.append(w1); g1.append(b1.reshape(1, FFN_DIM))
        f2.append(w2); g2.append(b2.reshape(1, D_MODEL))
        ln.append(_ln_rows(3))
    return _finish_stack(wi, bi, wo, bo, f1, g1, f2, g2, ln)


def _stack_stacks(stacks):
    return {k: jnp.stack([s[k] for s in stacks], axis=0) for k in stacks[0]}


def _gene_group_init(key):
    kp, ks = jax.random.split(key)
    pw, pb = _rand_linear(kp, 1, D_MODEL)
    return {"proj_w": pw.reshape(D_MODEL), "proj_b": pb, "stack": _enc_stack_init(ks)}


def _branch_unit_init(key):
    kd, ka, kb, kc, kr = jax.random.split(key, 5)
    aw, ab = _rand_linear(ka, D_MODEL, D_MODEL)
    bw, bb = _rand_linear(kb, D_MODEL, D_MODEL)
    cw, cb = _rand_linear(kc, D_MODEL, 1)
    rw, rb = _rand_linear(kr, D_MODEL, D_MODEL)
    return {"dec": _dec_stack_init(kd),
            "aw": aw.astype(WDT), "ab": ab.reshape(1, D_MODEL),
            "bw": bw.astype(WDT), "bb": bb.reshape(1, D_MODEL),
            "cw": cw.reshape(1, D_MODEL), "cb": cb.reshape(1, 1),
            "rw": rw.astype(WDT), "rb": rb.reshape(1, D_MODEL)}


def _uni_unit_init(key, with_classifier):
    kd, k1, k2, k3, k4 = jax.random.split(key, 5)
    m1w, m1b = _rand_linear(k1, 4 * D_MODEL, D_MODEL)
    m2w, m2b = _rand_linear(k2, D_MODEL, D_MODEL)
    if with_classifier:
        c1w, c1b = _rand_linear(k3, D_MODEL, D_MODEL)
        c2w, c2b = _rand_linear(k4, D_MODEL, N_CLASSES)
    else:
        c1w = jnp.zeros((D_MODEL, D_MODEL), jnp.float32)
        c1b = jnp.zeros((D_MODEL,), jnp.float32)
        c2w = jnp.zeros((D_MODEL, N_CLASSES), jnp.float32)
        c2b = jnp.zeros((N_CLASSES,), jnp.float32)
    return {"dec": _dec_stack_init(kd),
            "m1w": m1w.reshape(4, D_MODEL, D_MODEL).astype(WDT),
            "m1b": m1b.reshape(1, D_MODEL),
            "m2w": m2w.astype(WDT), "m2b": m2b.reshape(1, D_MODEL),
            "c1w": c1w.astype(WDT), "c1b": c1b.reshape(1, D_MODEL),
            "c2w": c2w.astype(WDT), "c2b": c2b.reshape(1, N_CLASSES)}


def make_positional_encoding(max_len, d):
    pos = jnp.arange(max_len, dtype=jnp.float32)[:, None]
    div = jnp.exp(jnp.arange(0, d, 2, dtype=jnp.float32) * (-math.log(10000.0) / d))
    pe = jnp.zeros((max_len, d), jnp.float32)
    pe = pe.at[:, 0::2].set(jnp.sin(pos * div))
    pe = pe.at[:, 1::2].set(jnp.cos(pos * div))
    return pe


def init_params(key):
    ks = iter(jax.random.split(key, 32))
    nxt = lambda: next(ks)

    P = {}
    w, b = _rand_linear(nxt(), SIZE[0], SIZE[1])
    P["wsi"] = {"w": w.astype(WDT), "b": b.reshape(1, SIZE[1])}
    P["pe"] = make_positional_encoding(S_PAD, D_MODEL)

    groups = [_gene_group_init(nxt()) for _ in OMIC_SIZES]
    P["gene"] = {"proj_w": jnp.stack([g["proj_w"] for g in groups]),
                 "proj_b": jnp.stack([g["proj_b"] for g in groups]),
                 "stack": _stack_stacks([g["stack"] for g in groups])}

    a1, _ = _rand_linear(nxt(), 768, 192, bias=False)
    a2, _ = _rand_linear(nxt(), 192, 768, bias=False)
    pw, pb = _rand_linear(nxt(), 768, SIZE[2])
    P["text"] = {"a1": a1.astype(WDT), "a2": a2.astype(WDT),
                 "pw": pw.astype(WDT), "pb": pb.reshape(1, SIZE[2]),
                 "alpha": jnp.full((1, 1), 0.2, jnp.float32)}

    branch_units = [_branch_unit_init(nxt()), _branch_unit_init(nxt())]  # [omic, path]
    P["branch"] = {"dec": _stack_stacks([u["dec"] for u in branch_units])}
    for k in ("aw", "ab", "bw", "bb", "cw", "cb", "rw", "rb"):
        P["branch"][k] = jnp.stack([u[k] for u in branch_units])

    uni_units = ([_uni_unit_init(nxt(), with_classifier=False)]
                 + [_uni_unit_init(nxt(), with_classifier=True)
                    for _ in range(NUM_EXPERTS)])
    P["uni"] = {"dec": _stack_stacks([u["dec"] for u in uni_units])}
    for k in ("m1w", "m1b", "m2w", "m2b", "c1w", "c1b", "c2w", "c2b"):
        P["uni"][k] = jnp.stack([u[k] for u in uni_units])

    P["disease_emb"] = jax.random.normal(nxt(), (5, D_MODEL), jnp.float32)
    P["combine_w"] = jax.random.normal(nxt(), (NUM_EXPERTS, 2 * D_MODEL), jnp.float32)
    w1, b1 = _rand_linear(nxt(), SIZE[2], SIZE[2] // 2)
    w2, b2 = _rand_linear(nxt(), SIZE[2] // 2, 5)
    P["cdh"] = {"w1": w1.astype(WDT), "b1": b1.reshape(1, -1),
                "w2": w2.astype(WDT), "b2": b2.reshape(1, -1)}
    return P


# ---------------------------------------------------------------------------
if __name__ == "__main__":
    root = jax.random.PRNGKey(0)
    kparam, kpath, komic, kmask, ktext = jax.random.split(root, 5)
    params = init_params(kparam)

    path_feats = jax.random.normal(kpath, (N_PATH, SIZE[0]), jnp.float32)
    omics, masks = [], []
    for i, g in enumerate(OMIC_SIZES):
        omics.append(jax.random.normal(jax.random.fold_in(komic, i), (g,), jnp.float32))
        m = (jax.random.uniform(jax.random.fold_in(kmask, i), (g,)) > 0.2).astype(jnp.float32)
        masks.append(m.at[0].set(1.0))          # keep at least one valid gene site
    # synthetic CLIP text features: cancer / demographic / diagnosis / treatment / routing
    clip_feats = jax.random.normal(ktext, (5, 768), jnp.float32)

    item = {"path_feats": path_feats, "omics": omics, "masks": masks,
            "clip_feats": clip_feats, "disease_id": 1, "omic_missing": False}

    out = umpsnet_forward(params, item)
    out = {k: jax.block_until_ready(v) for k, v in out.items()}
    assert out["hazards"].shape == (1, N_CLASSES)
    assert out["S"].shape == (1, N_CLASSES)
    assert out["logits_dataset_h"].shape == (1, 5)
    assert all(bool(jnp.all(jnp.isfinite(v))) for v in out.values())
    print("KERNEL_OK")
</pallas_src>

<mosaic_0001>
module attributes {stable_mosaic.version = 11 : i64} {
  func.func @_wsi_kernel(%arg0: memref<8x768xf32, #tpu.memory_space<vmem>>, %arg1: memref<768x256xbf16, #tpu.memory_space<vmem>>, %arg2: memref<1x256xf32, #tpu.memory_space<vmem>>, %arg3: memref<8x256xf32, #tpu.memory_space<vmem>>) attributes {dimension_semantics = [], scalar_prefetch = 0 : i64, scratch_operands = 0 : i64, tpu.core_type = #tpu.core_type<tc>} {
    %c0 = arith.constant 0 : index
    %c0_0 = arith.constant 0 : index
    %0 = vector.load %arg0[%c0, %c0_0] : memref<8x768xf32, #tpu.memory_space<vmem>>, vector<8x768xf32>
    %c0_1 = arith.constant 0 : index
    %c0_2 = arith.constant 0 : index
    %1 = vector.load %arg1[%c0_1, %c0_2] : memref<768x256xbf16, #tpu.memory_space<vmem>>, vector<768x256xbf16>
    %2 = arith.extf %1 : vector<768x256xbf16> to vector<768x256xf32>
    %cst = arith.constant dense<0.000000e+00> : vector<8x256xf32>
    %3 = tpu.matmul %0, %2, %cst {dimension_numbers = #tpu.dot_dimension_numbers<[1], [0], [0], [1], [0, 0, 1, 1], [], []>} : vector<8x768xf32>, vector<768x256xf32>, vector<8x256xf32> -> vector<8x256xf32>
    %c0_3 = arith.constant 0 : index
    %c0_4 = arith.constant 0 : index
    %4 = vector.load %arg2[%c0_3, %c0_4] : memref<1x256xf32, #tpu.memory_space<vmem>>, vector<1x256xf32>
    %5 = vector.broadcast %4 : vector<1x256xf32> to vector<8x256xf32>
    %6 = arith.addf %3, %5 : vector<8x256xf32>
    %cst_5 = arith.constant 0.000000e+00 : f32
    %7 = vector.broadcast %cst_5 : f32 to vector<8x256xf32>
    %8 = arith.maximumf %6, %7 : vector<8x256xf32>
    %c0_6 = arith.constant 0 : index
    %c0_7 = arith.constant 0 : index
    %9 = vector.load %arg3[%c0_6, %c0_7] : memref<8x256xf32, #tpu.memory_space<vmem>>, vector<8x256xf32>
    tpu.vector_store %arg3[%c0_6, %c0_7], %8 {strides = array<i32>} : memref<8x256xf32, #tpu.memory_space<vmem>>, vector<8x256xf32>,
    return
  }
}

</mosaic_0001>

<llo_original>
// kernel: tpu_custom_call.1
$region0: #{tpu_custom_call.1}
  #allocation0 [shape = 'u32[]', space=smem, size = 0x4, offset = 0x4, fixed_abs, tag = 'smem constant byte address 0x4 - core index']
  #allocation1 [shape = 'u32[144,128]{1,0:T(1,128)}', space=vmem, size = 0x12000, scoped, tag = 'internal scratch']
  %s0 = inlined_call_operand.hbm [shape: f32[8,768], index: 0, kind: input, shape index: {}]
  %s1 = inlined_call_operand.hbm [shape: bf16[768,256], index: 1, kind: input, shape index: {}]
  %s2 = inlined_call_operand.vmem [shape: f32[1,256], index: 2, kind: input, shape index: {}]
  %s3 = inlined_call_operand.hbm [shape: f32[8,256], index: 3, kind: output, shape index: {}]
  %s4 = sld [smem:[#allocation0]]
  $region30: #{tpu_custom_call.1} parent=0
    _
  %s6 = ssub.s32 1, %s4
  %s7 = scalar_select 0, %s6, %s4
  $region1: #{tpu_custom_call.1} parent=0
    #allocation2 [shape = 'u8[24576]{0}', space=vmem, size = 0x6000, scoped, tag = 'input window, operand 0, single buffered']
    #allocation3 [shape = 's32[1]{0}', space=sflag, size = 0x4, scoped, tag = 'scoped memory for tpu_custom_call.1']
    #allocation4 [shape = 's32[1]{0}', space=sflag, size = 0x4, scoped, tag = 'scoped memory for tpu_custom_call.1']
    #allocation5 [shape = 'u8[393216]{0}', space=vmem, size = 0x60000, scoped, tag = 'input window, operand 1, single buffered']
    #allocation6 [shape = 's32[1]{0}', space=sflag, size = 0x4, scoped, tag = 'scoped memory for tpu_custom_call.1']
    #allocation7 [shape = 'u8[8192]{0}', space=vmem, size = 0x2000, scoped, tag = 'output window, operand 0, single buffered']
    %8 = vsyncpa [#allocation3], 0
    %9 = vsyncpa [#allocation6], 0
    %10 = vsyncpa [#allocation4], 0
    // Predicated region
    $region2: #{tpu_custom_call.1} parent=1 // pred_check
      _
    $region3: #{tpu_custom_call.1} parent=1 // pred_check_branch
      %12 = sbr.rel (0) target = $region5
    $region4: #{tpu_custom_call.1} parent=1 // pred_region
      %s14 = ssub.s32 768, 768
      %15 = vsyncadd [#allocation3], %s14
      %s17 = sshll.u32 [#allocation2], 4
      %s18 = int_to_ptr.vmem [resolvable:$true] %s17
      %20 = dma.hbm_to_vmem [thread:$0]  %s0, 768, %s18, [#allocation3]
    $region5: #{tpu_custom_call.1} parent=1 // pred_fallthru
      _
    // Predicated region
    $region6: #{tpu_custom_call.1} parent=1 // pred_check
      _
    $region7: #{tpu_custom_call.1} parent=1 // pred_check_branch
      %22 = sbr.rel (0) target = $region9
    $region8: #{tpu_custom_call.1} parent=1 // pred_region
      %s24 = ssub.s32 12288, 12288
      %25 = vsyncadd [#allocation6], %s24
      %s26 = sshll.u32 [#allocation5], 4
      %s27 = int_to_ptr.vmem [resolvable:$true] %s26
      %32 = dma.hbm_to_vmem [thread:$0]  %s1, 12288, %s27, [#allocation6], 128, 128, 8
    $region9: #{tpu_custom_call.1} parent=1 // pred_fallthru
      _
    // Predicated region
    $region10: #{tpu_custom_call.1} parent=1 // pred_check
      _
    $region11: #{tpu_custom_call.1} parent=1 // pred_check_branch
      %34 = sbr.rel (0) target = $region13
    $region12: #{tpu_custom_call.1} parent=1 // pred_region
      _
    $region13: #{tpu_custom_call.1} parent=1 // pred_fallthru
      _
    // Predicated region
    $region14: #{tpu_custom_call.1} parent=1 // pred_check
      _
    $region15: #{tpu_custom_call.1} parent=1 // pred_check_branch
      %36 = sbr.rel (0) target = $region17
    $region16: #{tpu_custom_call.1} parent=1 // pred_region
      %37 = dma.done [#allocation3], 768
    $region17: #{tpu_custom_call.1} parent=1 // pred_fallthru
      _
    // Predicated region
    $region18: #{tpu_custom_call.1} parent=1 // pred_check
      _
    $region19: #{tpu_custom_call.1} parent=1 // pred_check_branch
      %39 = sbr.rel (0) target = $region21
    $region20: #{tpu_custom_call.1} parent=1 // pred_region
      %40 = dma.done [#allocation6], 12288
    $region21: #{tpu_custom_call.1} parent=1 // pred_fallthru
      _
    %v41 = vld [vmem:[#allocation2] sm:$0xff]
    %v42 = vld [vmem:[#allocation2 + $0x8] sm:$0xff]
    %v43 = vld [vmem:[#allocation2 + $0x10] sm:$0xff]
    %v44 = vld [vmem:[#allocation2 + $0x18] sm:$0xff]
    %v45 = vld [vmem:[#allocation2 + $0x20] sm:$0xff]
    %v46 = vld [vmem:[#allocation2 + $0x28] sm:$0xff]
    %v47 = vld [vmem:[#allocation5] sm:$0xff]
    %v48 = vld [vmem:[#allocation5 + $0x8] sm:$0xff]
    %v49 = vld [vmem:[#allocation5 + $0x10] sm:$0xff]
    %v50 = vld [vmem:[#allocation5 + $0x18] sm:$0xff]
    %v51 = vld [vmem:[#allocation5 + $0x20] sm:$0xff]
    %v52 = vld [vmem:[#allocation5 + $0x28] sm:$0xff]
    %v53 = vld [vmem:[#allocation5 + $0x30] sm:$0xff]
    %v54 = vld [vmem:[#allocation5 + $0x38] sm:$0xff]
    %v55 = vld [vmem:[#allocation5 + $0x40] sm:$0xff]
    %v56 = vld [vmem:[#allocation5 + $0x48] sm:$0xff]
    %v57 = vld [vmem:[#allocation5 + $0x50] sm:$0xff]
    %v58 = vld [vmem:[#allocation5 + $0x58] sm:$0xff]
    %v59 = vld [vmem:[#allocation5 + $0x60] sm:$0xff]
    %v60 = vld [vmem:[#allocation5 + $0x68] sm:$0xff]
    %v61 = vld [vmem:[#allocation5 + $0x70] sm:$0xff]
    %v62 = vld [vmem:[#allocation5 + $0x78] sm:$0xff]
    %v63 = vld [vmem:[#allocation5 + $0x80] sm:$0xff]
    %v64 = vld [vmem:[#allocation5 + $0x88] sm:$0xff]
    %v65 = vld [vmem:[#allocation5 + $0x90] sm:$0xff]
    %v66 = vld [vmem:[#allocation5 + $0x98] sm:$0xff]
    %v67 = vld [vmem:[#allocation5 + $0xa0] sm:$0xff]
    %v68 = vld [vmem:[#allocation5 + $0xa8] sm:$0xff]
    %v69 = vld [vmem:[#allocation5 + $0xb0] sm:$0xff]
    %v70 = vld [vmem:[#allocation5 + $0xb8] sm:$0xff]
    %v71 = vld [vmem:[#allocation5 + $0xc0] sm:$0xff]
    %v72 = vld [vmem:[#allocation5 + $0xc8] sm:$0xff]
    %v73 = vld [vmem:[#allocation5 + $0xd0] sm:$0xff]
    %v74 = vld [vmem:[#allocation5 + $0xd8] sm:$0xff]
    %v75 = vld [vmem:[#allocation5 + $0xe0] sm:$0xff]
    %v76 = vld [vmem:[#allocation5 + $0xe8] sm:$0xff]
    %v77 = vld [vmem:[#allocation5 + $0xf0] sm:$0xff]
    %v78 = vld [vmem:[#allocation5 + $0xf8] sm:$0xff]
    %v79 = vld [vmem:[#allocation5 + $0x100] sm:$0xff]
    %v80 = vld [vmem:[#allocation5 + $0x108] sm:$0xff]
    %v81 = vld [vmem:[#allocation5 + $0x110] sm:$0xff]
    %v82 = vld [vmem:[#allocation5 + $0x118] sm:$0xff]
    %v83 = vld [vmem:[#allocation5 + $0x120] sm:$0xff]
    %v84 = vld [vmem:[#allocation5 + $0x128] sm:$0xff]
    %v85 = vld [vmem:[#allocation5 + $0x130] sm:$0xff]
    %v86 = vld [vmem:[#allocation5 + $0x138] sm:$0xff]
    %v87 = vld [vmem:[#allocation5 + $0x140] sm:$0xff]
    %v88 = vld [vmem:[#allocation5 + $0x148] sm:$0xff]
    %v89 = vld [vmem:[#allocation5 + $0x150] sm:$0xff]
    %v90 = vld [vmem:[#allocation5 + $0x158] sm:$0xff]
    %v91 = vld [vmem:[#allocation5 + $0x160] sm:$0xff]
    %v92 = vld [vmem:[#allocation5 + $0x168] sm:$0xff]
    %v93 = vld [vmem:[#allocation5 + $0x170] sm:$0xff]
    %v94 = vld [vmem:[#allocation5 + $0x178] sm:$0xff]
    %v95 = vld [vmem:[#allocation5 + $0x180] sm:$0xff]
    %v96 = vld [vmem:[#allocation5 + $0x188] sm:$0xff]
    %v97 = vld [vmem:[#allocation5 + $0x190] sm:$0xff]
    %v98 = vld [vmem:[#allocation5 + $0x198] sm:$0xff]
    %v99 = vld [vmem:[#allocation5 + $0x1a0] sm:$0xff]
    %v100 = vld [vmem:[#allocation5 + $0x1a8] sm:$0xff]
    %v101 = vld [vmem:[#allocation5 + $0x1b0] sm:$0xff]
    %v102 = vld [vmem:[#allocation5 + $0x1b8] sm:$0xff]
    %v103 = vld [vmem:[#allocation5 + $0x1c0] sm:$0xff]
    %v104 = vld [vmem:[#allocation5 + $0x1c8] sm:$0xff]
    %v105 = vld [vmem:[#allocation5 + $0x1d0] sm:$0xff]
    %v106 = vld [vmem:[#allocation5 + $0x1d8] sm:$0xff]
    %v107 = vld [vmem:[#allocation5 + $0x1e0] sm:$0xff]
    %v108 = vld [vmem:[#allocation5 + $0x1e8] sm:$0xff]
    %v109 = vld [vmem:[#allocation5 + $0x1f0] sm:$0xff]
    %v110 = vld [vmem:[#allocation5 + $0x1f8] sm:$0xff]
    %v111 = vld [vmem:[#allocation5 + $0x200] sm:$0xff]
    %v112 = vld [vmem:[#allocation5 + $0x208] sm:$0xff]
    %v113 = vld [vmem:[#allocation5 + $0x210] sm:$0xff]
    %v114 = vld [vmem:[#allocation5 + $0x218] sm:$0xff]
    %v115 = vld [vmem:[#allocation5 + $0x220] sm:$0xff]
    %v116 = vld [vmem:[#allocation5 + $0x228] sm:$0xff]
    %v117 = vld [vmem:[#allocation5 + $0x230] sm:$0xff]
    %v118 = vld [vmem:[#allocation5 + $0x238] sm:$0xff]
    %v119 = vld [vmem:[#allocation5 + $0x240] sm:$0xff]
    %v120 = vld [vmem:[#allocation5 + $0x248] sm:$0xff]
    %v121 = vld [vmem:[#allocation5 + $0x250] sm:$0xff]
    %v122 = vld [vmem:[#allocation5 + $0x258] sm:$0xff]
    %v123 = vld [vmem:[#allocation5 + $0x260] sm:$0xff]
    %v124 = vld [vmem:[#allocation5 + $0x268] sm:$0xff]
    %v125 = vld [vmem:[#allocation5 + $0x270] sm:$0xff]
    %v126 = vld [vmem:[#allocation5 + $0x278] sm:$0xff]
    %v127 = vld [vmem:[#allocation5 + $0x280] sm:$0xff]
    %v128 = vld [vmem:[#allocation5 + $0x288] sm:$0xff]
    %v129 = vld [vmem:[#allocation5 + $0x290] sm:$0xff]
    %v130 = vld [vmem:[#allocation5 + $0x298] sm:$0xff]
    %v131 = vld [vmem:[#allocation5 + $0x2a0] sm:$0xff]
    %v132 = vld [vmem:[#allocation5 + $0x2a8] sm:$0xff]
    %v133 = vld [vmem:[#allocation5 + $0x2b0] sm:$0xff]
    %v134 = vld [vmem:[#allocation5 + $0x2b8] sm:$0xff]
    %v135 = vld [vmem:[#allocation5 + $0x2c0] sm:$0xff]
    %v136 = vld [vmem:[#allocation5 + $0x2c8] sm:$0xff]
    %v137 = vld [vmem:[#allocation5 + $0x2d0] sm:$0xff]
    %v138 = vld [vmem:[#allocation5 + $0x2d8] sm:$0xff]
    %v139 = vld [vmem:[#allocation5 + $0x2e0] sm:$0xff]
    %v140 = vld [vmem:[#allocation5 + $0x2e8] sm:$0xff]
    %v141 = vld [vmem:[#allocation5 + $0x2f0] sm:$0xff]
    %v142 = vld [vmem:[#allocation5 + $0x2f8] sm:$0xff]
    %v143 = vunpack.c.l.bf16 %v47
    %v144 = vunpack.c.h.bf16 %v47
    %v145 = vunpack.c.l.bf16 %v48
    %v146 = vunpack.c.h.bf16 %v48
    %v147 = vunpack.c.l.bf16 %v49
    %v148 = vunpack.c.h.bf16 %v49
    %v149 = vunpack.c.l.bf16 %v50
    %v150 = vunpack.c.h.bf16 %v50
    %v151 = vunpack.c.l.bf16 %v51
    %v152 = vunpack.c.h.bf16 %v51
    %v153 = vunpack.c.l.bf16 %v52
    %v154 = vunpack.c.h.bf16 %v52
    %v155 = vunpack.c.l.bf16 %v53
    %v156 = vunpack.c.h.bf16 %v53
    %v157 = vunpack.c.l.bf16 %v54
    %v158 = vunpack.c.h.bf16 %v54
    %v159 = vunpack.c.l.bf16 %v55
    %v160 = vunpack.c.h.bf16 %v55
    %v161 = vunpack.c.l.bf16 %v56
    %v162 = vunpack.c.h.bf16 %v56
    %v163 = vunpack.c.l.bf16 %v57
    %v164 = vunpack.c.h.bf16 %v57
    %v165 = vunpack.c.l.bf16 %v58
    %v166 = vunpack.c.h.bf16 %v58
    %v167 = vunpack.c.l.bf16 %v59
    %v168 = vunpack.c.h.bf16 %v59
    %v169 = vunpack.c.l.bf16 %v60
    %v170 = vunpack.c.h.bf16 %v60
    %v171 = vunpack.c.l.bf16 %v61
    %v172 = vunpack.c.h.bf16 %v61
    %v173 = vunpack.c.l.bf16 %v62
    %v174 = vunpack.c.h.bf16 %v62
    %v175 = vunpack.c.l.bf16 %v63
    %v176 = vunpack.c.h.bf16 %v63
    %v177 = vunpack.c.l.bf16 %v64
    %v178 = vunpack.c.h.bf16 %v64
    %v179 = vunpack.c.l.bf16 %v65
    %v180 = vunpack.c.h.bf16 %v65
    %v181 = vunpack.c.l.bf16 %v66
    %v182 = vunpack.c.h.bf16 %v66
    %v183 = vunpack.c.l.bf16 %v67
    %v184 = vunpack.c.h.bf16 %v67
    %v185 = vunpack.c.l.bf16 %v68
    %v186 = vunpack.c.h.bf16 %v68
    %v187 = vunpack.c.l.bf16 %v69
    %v188 = vunpack.c.h.bf16 %v69
    %v189 = vunpack.c.l.bf16 %v70
    %v190 = vunpack.c.h.bf16 %v70
    %v191 = vunpack.c.l.bf16 %v71
    %v192 = vunpack.c.h.bf16 %v71
    %v193 = vunpack.c.l.bf16 %v72
    %v194 = vunpack.c.h.bf16 %v72
    %v195 = vunpack.c.l.bf16 %v73
    %v196 = vunpack.c.h.bf16 %v73
    %v197 = vunpack.c.l.bf16 %v74
    %v198 = vunpack.c.h.bf16 %v74
    %v199 = vunpack.c.l.bf16 %v75
    %v200 = vunpack.c.h.bf16 %v75
    %v201 = vunpack.c.l.bf16 %v76
    %v202 = vunpack.c.h.bf16 %v76
    %v203 = vunpack.c.l.bf16 %v77
    %v204 = vunpack.c.h.bf16 %v77
    %v205 = vunpack.c.l.bf16 %v78
    %v206 = vunpack.c.h.bf16 %v78
    %v207 = vunpack.c.l.bf16 %v79
    %v208 = vunpack.c.h.bf16 %v79
    %v209 = vunpack.c.l.bf16 %v80
    %v210 = vunpack.c.h.bf16 %v80
    %v211 = vunpack.c.l.bf16 %v81
    %v212 = vunpack.c.h.bf16 %v81
    %v213 = vunpack.c.l.bf16 %v82
    %v214 = vunpack.c.h.bf16 %v82
    %v215 = vunpack.c.l.bf16 %v83
    %v216 = vunpack.c.h.bf16 %v83
    %v217 = vunpack.c.l.bf16 %v84
    %v218 = vunpack.c.h.bf16 %v84
    %v219 = vunpack.c.l.bf16 %v85
    %v220 = vunpack.c.h.bf16 %v85
    %v221 = vunpack.c.l.bf16 %v86
    %v222 = vunpack.c.h.bf16 %v86
    %v223 = vunpack.c.l.bf16 %v87
    %v224 = vunpack.c.h.bf16 %v87
    %v225 = vunpack.c.l.bf16 %v88
    %v226 = vunpack.c.h.bf16 %v88
    %v227 = vunpack.c.l.bf16 %v89
    %v228 = vunpack.c.h.bf16 %v89
    %v229 = vunpack.c.l.bf16 %v90
    %v230 = vunpack.c.h.bf16 %v90
    %v231 = vunpack.c.l.bf16 %v91
    %v232 = vunpack.c.h.bf16 %v91
    %v233 = vunpack.c.l.bf16 %v92
    %v234 = vunpack.c.h.bf16 %v92
    %v235 = vunpack.c.l.bf16 %v93
    %v236 = vunpack.c.h.bf16 %v93
    %v237 = vunpack.c.l.bf16 %v94
    %v238 = vunpack.c.h.bf16 %v94
    %v239 = vunpack.c.l.bf16 %v95
    %v240 = vunpack.c.h.bf16 %v95
    %v241 = vunpack.c.l.bf16 %v96
    %v242 = vunpack.c.h.bf16 %v96
    %v243 = vunpack.c.l.bf16 %v97
    %v244 = vunpack.c.h.bf16 %v97
    %v245 = vunpack.c.l.bf16 %v98
    %v246 = vunpack.c.h.bf16 %v98
    %v247 = vunpack.c.l.bf16 %v99
    %v248 = vunpack.c.h.bf16 %v99
    %v249 = vunpack.c.l.bf16 %v100
    %v250 = vunpack.c.h.bf16 %v100
    %v251 = vunpack.c.l.bf16 %v101
    %v252 = vunpack.c.h.bf16 %v101
    %v253 = vunpack.c.l.bf16 %v102
    %v254 = vunpack.c.h.bf16 %v102
    %v255 = vunpack.c.l.bf16 %v103
    %v256 = vunpack.c.h.bf16 %v103
    %v257 = vunpack.c.l.bf16 %v104
    %v258 = vunpack.c.h.bf16 %v104
    %v259 = vunpack.c.l.bf16 %v105
    %v260 = vunpack.c.h.bf16 %v105
    %v261 = vunpack.c.l.bf16 %v106
    %v262 = vunpack.c.h.bf16 %v106
    %v263 = vunpack.c.l.bf16 %v107
    %v264 = vunpack.c.h.bf16 %v107
    %v265 = vunpack.c.l.bf16 %v108
    %v266 = vunpack.c.h.bf16 %v108
    %v267 = vunpack.c.l.bf16 %v109
    %v268 = vunpack.c.h.bf16 %v109
    %v269 = vunpack.c.l.bf16 %v110
    %v270 = vunpack.c.h.bf16 %v110
    %v271 = vunpack.c.l.bf16 %v111
    %v272 = vunpack.c.h.bf16 %v111
    %v273 = vunpack.c.l.bf16 %v112
    %v274 = vunpack.c.h.bf16 %v112
    %v275 = vunpack.c.l.bf16 %v113
    %v276 = vunpack.c.h.bf16 %v113
    %v277 = vunpack.c.l.bf16 %v114
    %v278 = vunpack.c.h.bf16 %v114
    %v279 = vunpack.c.l.bf16 %v115
    %v280 = vunpack.c.h.bf16 %v115
    %v281 = vunpack.c.l.bf16 %v116
    %v282 = vunpack.c.h.bf16 %v116
    %v283 = vunpack.c.l.bf16 %v117
    %v284 = vunpack.c.h.bf16 %v117
    %v285 = vunpack.c.l.bf16 %v118
    %v286 = vunpack.c.h.bf16 %v118
    %v287 = vunpack.c.l.bf16 %v119
    %v288 = vunpack.c.h.bf16 %v119
    %v289 = vunpack.c.l.bf16 %v120
    %v290 = vunpack.c.h.bf16 %v120
    %v291 = vunpack.c.l.bf16 %v121
    %v292 = vunpack.c.h.bf16 %v121
    %v293 = vunpack.c.l.bf16 %v122
    %v294 = vunpack.c.h.bf16 %v122
    %v295 = vunpack.c.l.bf16 %v123
    %v296 = vunpack.c.h.bf16 %v123
    %v297 = vunpack.c.l.bf16 %v124
    %v298 = vunpack.c.h.bf16 %v124
    %v299 = vunpack.c.l.bf16 %v125
    %v300 = vunpack.c.h.bf16 %v125
    %v301 = vunpack.c.l.bf16 %v126
    %v302 = vunpack.c.h.bf16 %v126
    %v303 = vunpack.c.l.bf16 %v127
    %v304 = vunpack.c.h.bf16 %v127
    %v305 = vunpack.c.l.bf16 %v128
    %v306 = vunpack.c.h.bf16 %v128
    %v307 = vunpack.c.l.bf16 %v129
    %v308 = vunpack.c.h.bf16 %v129
    %v309 = vunpack.c.l.bf16 %v130
    %v310 = vunpack.c.h.bf16 %v130
    %v311 = vunpack.c.l.bf16 %v131
    %v312 = vunpack.c.h.bf16 %v131
    %v313 = vunpack.c.l.bf16 %v132
    %v314 = vunpack.c.h.bf16 %v132
    %v315 = vunpack.c.l.bf16 %v133
    %v316 = vunpack.c.h.bf16 %v133
    %v317 = vunpack.c.l.bf16 %v134
    %v318 = vunpack.c.h.bf16 %v134
    %v319 = vunpack.c.l.bf16 %v135
    %v320 = vunpack.c.h.bf16 %v135
    %v321 = vunpack.c.l.bf16 %v136
    %v322 = vunpack.c.h.bf16 %v136
    %v323 = vunpack.c.l.bf16 %v137
    %v324 = vunpack.c.h.bf16 %v137
    %v325 = vunpack.c.l.bf16 %v138
    %v326 = vunpack.c.h.bf16 %v138
    %v327 = vunpack.c.l.bf16 %v139
    %v328 = vunpack.c.h.bf16 %v139
    %v329 = vunpack.c.l.bf16 %v140
    %v330 = vunpack.c.h.bf16 %v140
    %v331 = vunpack.c.l.bf16 %v141
    %v332 = vunpack.c.h.bf16 %v141
    %v333 = vunpack.c.l.bf16 %v142
    %v334 = vunpack.c.h.bf16 %v142
    %v335 = vld [vmem:[%s2] sm:$0x3]
    %v337 = vlaneseq
    %v338 = vshrl.u32 %v337, 7
    %v339 = vsub.s32 0, %v338
    %v340 = vrot.slane %v335, %v339
    %v341 = vlaneseq
    %v342 = vshrl.u32 %v341, 7
    %v343 = vsub.s32 1, %v342
    %v344 = vrot.slane %v335, %v343
    %347 = vmatprep.subr.mxu0 %v174
    %348 = vmatpush1.msra.mxu0 %v173
    %349 = vmatprep.subr.mxu0 %v172
    %350 = vmatpush1.msra.mxu0 %v171
    %351 = vmatprep.subr.mxu0 %v170
    %352 = vmatpush1.msra.mxu0 %v169
    %353 = vmatprep.subr.mxu0 %v168
    %354 = vmatpush1.msra.mxu0 %v167
    %355 = vmatprep.subr.mxu0 %v166
    %356 = vmatpush1.msra.mxu0 %v165
    %357 = vmatprep.subr.mxu0 %v164
    %358 = vmatpush1.msra.mxu0 %v163
    %359 = vmatprep.subr.mxu0 %v162
    %360 = vmatpush1.msra.mxu0 %v161
    %361 = vmatprep.subr.mxu0 %v160
    %362 = vmatpush1.msra.mxu0 %v159
    %363 = vmatprep.subr.mxu0 %v158
    %364 = vmatpush1.msra.mxu0 %v157
    %365 = vmatprep.subr.mxu0 %v156
    %366 = vmatpush1.msra.mxu0 %v155
    %367 = vmatprep.subr.mxu0 %v154
    %368 = vmatpush1.msra.mxu0 %v153
    %369 = vmatprep.subr.mxu0 %v152
    %370 = vmatpush1.msra.mxu0 %v151
    %371 = vmatprep.subr.mxu0 %v150
    %372 = vmatpush1.msra.mxu0 %v149
    %373 = vmatprep.subr.mxu0 %v148
    %374 = vmatpush1.msra.mxu0 %v147
    %375 = vmatprep.subr.mxu0 %v146
    %376 = vmatpush1.msra.mxu0 %v145
    %377 = vmatprep.subr.mxu0 %v144
    %378 = vmatpush1.msra.mxu0 %v143
    %379 = vmatprep.subr.mxu0 %v206
    %380 = vmatpush2.msra.mxu0 %v205
    %381 = vmatprep.subr.mxu0 %v204
    %382 = vmatpush2.msra.mxu0 %v203
    %383 = vmatprep.subr.mxu0 %v202
    %384 = vmatpush2.msra.mxu0 %v201
    %385 = vmatprep.subr.mxu0 %v200
    %386 = vmatpush2.msra.mxu0 %v199
    %387 = vmatprep.subr.mxu0 %v198
    %388 = vmatpush2.msra.mxu0 %v197
    %389 = vmatprep.subr.mxu0 %v196
    %390 = vmatpush2.msra.mxu0 %v195
    %391 = vmatprep.subr.mxu0 %v194
    %392 = vmatpush2.msra.mxu0 %v193
    %393 = vmatprep.subr.mxu0 %v192
    %394 = vmatpush2.msra.mxu0 %v191
    %395 = vmatprep.subr.mxu0 %v190
    %396 = vmatpush2.msra.mxu0 %v189
    %397 = vmatprep.subr.mxu0 %v188
    %398 = vmatpush2.msra.mxu0 %v187
    %399 = vmatprep.subr.mxu0 %v186
    %400 = vmatpush2.msra.mxu0 %v185
    %401 = vmatprep.subr.mxu0 %v184
    %402 = vmatpush2.msra.mxu0 %v183
    %403 = vmatprep.subr.mxu0 %v182
    %404 = vmatpush2.msra.mxu0 %v181
    %405 = vmatprep.subr.mxu0 %v180
    %406 = vmatpush2.msra.mxu0 %v179
    %407 = vmatprep.subr.mxu0 %v178
    %408 = vmatpush2.msra.mxu0 %v177
    %409 = vmatprep.subr.mxu0 %v176
    %410 = vmatpush2.msra.mxu0 %v175
    %411 = vmatprep.mubr.f32.mxu0 %v42
    %412 = vmatmul.mubr.f32.gmra.mxu0 %v41
    %v413 = vpop.f32.mrf.mxu0
    %v414 = vadd.f32 %v340, %v413
    %v415 = vpop.f32.mrf.mxu0
    %v416 = vadd.f32 %v344, %v415
    %417 = vdwg.mxu0
    %418 = vmatprep.subr.mxu0 %v238
    %419 = vmatpush1.msra.mxu0 %v237
    %420 = vmatprep.subr.mxu0 %v236
    %421 = vmatpush1.msra.mxu0 %v235
    %422 = vmatprep.subr.mxu0 %v234
    %423 = vmatpush1.msra.mxu0 %v233
    %424 = vmatprep.subr.mxu0 %v232
    %425 = vmatpush1.msra.mxu0 %v231
    %426 = vmatprep.subr.mxu0 %v230
    %427 = vmatpush1.msra.mxu0 %v229
    %428 = vmatprep.subr.mxu0 %v228
    %429 = vmatpush1.msra.mxu0 %v227
    %430 = vmatprep.subr.mxu0 %v226
    %431 = vmatpush1.msra.mxu0 %v225
    %432 = vmatprep.subr.mxu0 %v224
    %433 = vmatpush1.msra.mxu0 %v223
    %434 = vmatprep.subr.mxu0 %v222
    %435 = vmatpush1.msra.mxu0 %v221
    %436 = vmatprep.subr.mxu0 %v220
    %437 = vmatpush1.msra.mxu0 %v219
    %438 = vmatprep.subr.mxu0 %v218
    %439 = vmatpush1.msra.mxu0 %v217
    %440 = vmatprep.subr.mxu0 %v216
    %441 = vmatpush1.msra.mxu0 %v215
    %442 = vmatprep.subr.mxu0 %v214
    %443 = vmatpush1.msra.mxu0 %v213
    %444 = vmatprep.subr.mxu0 %v212
    %445 = vmatpush1.msra.mxu0 %v211
    %446 = vmatprep.subr.mxu0 %v210
    %447 = vmatpush1.msra.mxu0 %v209
    %448 = vmatprep.subr.mxu0 %v208
    %449 = vmatpush1.msra.mxu0 %v207
    %450 = vmatprep.subr.mxu0 %v270
    %451 = vmatpush2.msra.mxu0 %v269
    %452 = vmatprep.subr.mxu0 %v268
    %453 = vmatpush2.msra.mxu0 %v267
    %454 = vmatprep.subr.mxu0 %v266
    %455 = vmatpush2.msra.mxu0 %v265
    %456 = vmatprep.subr.mxu0 %v264
    %457 = vmatpush2.msra.mxu0 %v263
    %458 = vmatprep.subr.mxu0 %v262
    %459 = vmatpush2.msra.mxu0 %v261
    %460 = vmatprep.subr.mxu0 %v260
    %461 = vmatpush2.msra.mxu0 %v259
    %462 = vmatprep.subr.mxu0 %v258
    %463 = vmatpush2.msra.mxu0 %v257
    %464 = vmatprep.subr.mxu0 %v256
    %465 = vmatpush2.msra.mxu0 %v255
    %466 = vmatprep.subr.mxu0 %v254
    %467 = vmatpush2.msra.mxu0 %v253
    %468 = vmatprep.subr.mxu0 %v252
    %469 = vmatpush2.msra.mxu0 %v251
    %470 = vmatprep.subr.mxu0 %v250
    %471 = vmatpush2.msra.mxu0 %v249
    %472 = vmatprep.subr.mxu0 %v248
    %473 = vmatpush2.msra.mxu0 %v247
    %474 = vmatprep.subr.mxu0 %v246
    %475 = vmatpush2.msra.mxu0 %v245
    %476 = vmatprep.subr.mxu0 %v244
    %477 = vmatpush2.msra.mxu0 %v243
    %478 = vmatprep.subr.mxu0 %v242
    %479 = vmatpush2.msra.mxu0 %v241
    %480 = vmatprep.subr.mxu0 %v240
    %481 = vmatpush2.msra.mxu0 %v239
    %482 = vmatprep.mubr.f32.mxu0 %v44
    %483 = vmatmul.mubr.f32.gmra.mxu0 %v43
    %v484 = vpop.f32.mrf.mxu0
    %v485 = vadd.f32 %v414, %v484
    %v486 = vpop.f32.mrf.mxu0
    %v487 = vadd.f32 %v416, %v486
    %488 = vdwg.mxu0
    %489 = vmatprep.subr.mxu0 %v302
    %490 = vmatpush1.msra.mxu0 %v301
    %491 = vmatprep.subr.mxu0 %v300
    %492 = vmatpush1.msra.mxu0 %v299
    %493 = vmatprep.subr.mxu0 %v298
    %494 = vmatpush1.msra.mxu0 %v297
    %495 = vmatprep.subr.mxu0 %v296
    %496 = vmatpush1.msra.mxu0 %v295
    %497 = vmatprep.subr.mxu0 %v294
    %498 = vmatpush1.msra.mxu0 %v293
    %499 = vmatprep.subr.mxu0 %v292
    %500 = vmatpush1.msra.mxu0 %v291
    %501 = vmatprep.subr.mxu0 %v290
    %502 = vmatpush1.msra.mxu0 %v289
    %503 = vmatprep.subr.mxu0 %v288
    %504 = vmatpush1.msra.mxu0 %v287
    %505 = vmatprep.subr.mxu0 %v286
    %506 = vmatpush1.msra.mxu0 %v285
    %507 = vmatprep.subr.mxu0 %v284
    %508 = vmatpush1.msra.mxu0 %v283
    %509 = vmatprep.subr.mxu0 %v282
    %510 = vmatpush1.msra.mxu0 %v281
    %511 = vmatprep.subr.mxu0 %v280
    %512 = vmatpush1.msra.mxu0 %v279
    %513 = vmatprep.subr.mxu0 %v278
    %514 = vmatpush1.msra.mxu0 %v277
    %515 = vmatprep.subr.mxu0 %v276
    %516 = vmatpush1.msra.mxu0 %v275
    %517 = vmatprep.subr.mxu0 %v274
    %518 = vmatpush1.msra.mxu0 %v273
    %519 = vmatprep.subr.mxu0 %v272
    %520 = vmatpush1.msra.mxu0 %v271
    %521 = vmatprep.subr.mxu0 %v334
    %522 = vmatpush2.msra.mxu0 %v333
    %523 = vmatprep.subr.mxu0 %v332
    %524 = vmatpush2.msra.mxu0 %v331
    %525 = vmatprep.subr.mxu0 %v330
    %526 = vmatpush2.msra.mxu0 %v329
    %527 = vmatprep.subr.mxu0 %v328
    %528 = vmatpush2.msra.mxu0 %v327
    %529 = vmatprep.subr.mxu0 %v326
    %530 = vmatpush2.msra.mxu0 %v325
    %531 = vmatprep.subr.mxu0 %v324
    %532 = vmatpush2.msra.mxu0 %v323
    %533 = vmatprep.subr.mxu0 %v322
    %534 = vmatpush2.msra.mxu0 %v321
    %535 = vmatprep.subr.mxu0 %v320
    %536 = vmatpush2.msra.mxu0 %v319
    %537 = vmatprep.subr.mxu0 %v318
    %538 = vmatpush2.msra.mxu0 %v317
    %539 = vmatprep.subr.mxu0 %v316
    %540 = vmatpush2.msra.mxu0 %v315
    %541 = vmatprep.subr.mxu0 %v314
    %542 = vmatpush2.msra.mxu0 %v313
    %543 = vmatprep.subr.mxu0 %v312
    %544 = vmatpush2.msra.mxu0 %v311
    %545 = vmatprep.subr.mxu0 %v310
    %546 = vmatpush2.msra.mxu0 %v309
    %547 = vmatprep.subr.mxu0 %v308
    %548 = vmatpush2.msra.mxu0 %v307
    %549 = vmatprep.subr.mxu0 %v306
    %550 = vmatpush2.msra.mxu0 %v305
    %551 = vmatprep.subr.mxu0 %v304
    %552 = vmatpush2.msra.mxu0 %v303
    %553 = vmatprep.mubr.f32.mxu0 %v46
    %554 = vmatmul.mubr.f32.gmra.mxu0 %v45
    %v555 = vpop.f32.mrf.mxu0
    %v556 = vadd.f32 %v485, %v555
    %v557 = vpop.f32.mrf.mxu0
    %v558 = vadd.f32 %v487, %v557
    %559 = vdwg.mxu0
    %v560 = vmax.f32 %v556, 0.0
    %v561 = vmax.f32 %v558, 0.0
    %562 = vst [vmem:[#allocation7] sm:$0xff] %v560
    %563 = vst [vmem:[#allocation7 + $0x8] sm:$0xff] %v561
    // Predicated region
    $region22: #{tpu_custom_call.1} parent=1 // pred_check
      _
    $region23: #{tpu_custom_call.1} parent=1 // pred_check_branch
      %565 = sbr.rel (0) target = $region25
    $region24: #{tpu_custom_call.1} parent=1 // pred_region
      %s567 = ssub.s32 256, 256
      %568 = vsyncadd [#allocation4], %s567
      %s570 = sshll.u32 [#allocation7], 4
      %s571 = int_to_ptr.vmem [resolvable:$true] %s570
      %573 = dma.vmem_to_hbm [thread:$0]  %s571, 256, %s3, [#allocation4]
    $region25: #{tpu_custom_call.1} parent=1 // pred_fallthru
      _
    // Predicated region
    $region26: #{tpu_custom_call.1} parent=1 // pred_check
      _
    $region27: #{tpu_custom_call.1} parent=1 // pred_check_branch
      %575 = sbr.rel (0) target = $region29
    $region28: #{tpu_custom_call.1} parent=1 // pred_region
      %576 = dma.done [#allocation4], 256
    $region29: #{tpu_custom_call.1} parent=1 // pred_fallthru
      _
    %577 = vsyncpa [#allocation3], 1
    %578 = vsyncpa [#allocation6], 1
    %579 = vsyncpa [#allocation4], 1

</llo_original>
